<compile_context>
chip_gen: v5e
topology: v5e:2x2
jax: 0.10.0
libtpu: 0.0.40
codegen_flags: <defaults>
</compile_context>

<pallas_src>
import functools

import jax
import jax.numpy as jnp
from jax.experimental import pallas as pl
from jax.experimental.pallas import tpu as pltpu


def _cdiv(a, b):
    return -(-a // b)


def _round_up(x, m):
    return _cdiv(x, m) * m


def _extend_kernel(x_ref, w_ref, b_ref, scale_ref, o_ref, *, C, C1):
    # x_ref:     (TM, C)        input row tile
    # w_ref:     (C, C1)        linear extender weight  (grid-resident)
    # b_ref:     (1, C1)        linear extender bias    (grid-resident)
    # scale_ref: (1, C + C1)    elementwise extender per-channel scale
    # o_ref:     (TM, 2*(C+C1)) output row tile (true width, no pad lanes)
    x = x_ref[...]
    sc = scale_ref[...]

    # --- extender 1: linear feature (MXU) ------------------------------------
    feat = jnp.dot(x, w_ref[...], preferred_element_type=jnp.float32)
    feat = jnp.maximum(feat + b_ref[...], 0.0)

    # --- assemble output via per-piece static-slice stores -------------------
    # Layout: [ x | feat | tanh(x*s_x) | tanh(feat*s_f) ]
    # x pieces first so x's vregs are released as soon as its tanh is stored.
    o_ref[:, 0:C] = x
    o_ref[:, C + C1:2 * C + C1] = jnp.tanh(x * sc[:, :C])
    o_ref[:, C:C + C1] = feat
    o_ref[:, 2 * C + C1:2 * (C + C1)] = jnp.tanh(feat * sc[:, C:])


def _choose_tile(M, C, C_out, params_bytes, tile_m):
    """Row-tile: VMEM-budgeted, >= 8 grid steps when M allows, multiple of 8."""
    try:
        phys_vmem = pltpu.get_tpu_info().vmem_capacity_bytes
    except Exception:
        phys_vmem = 64 << 20  # conservative: v7x per-core VMEM

    # Double-buffered input + output row tiles must fit in ~half of VMEM.
    bytes_per_row = 4 * 2 * (C + C_out)
    cap_rows = max(8, (phys_vmem // 2 - 2 * params_bytes) // bytes_per_row)

    eff = min(tile_m, cap_rows, _round_up(M, 8))
    if M >= 16:   # >= 2 grid steps (feed both TCs on v7x)
        eff = min(eff, _round_up(_cdiv(M, 2), 8))
    if M >= 64:   # >= 8 grid steps (>= 4 per TensorCore on v7x)
        eff = min(eff, _round_up(_cdiv(M, 8), 8))
    eff = max(8, (eff // 8) * 8)

    needed = eff * bytes_per_row + 2 * params_bytes + (2 << 20)
    vmem_limit = int(min(phys_vmem, max(needed, 32 << 20)))
    return eff, vmem_limit


def extend_data_multiple(data, w, b, scale, *, tile_m=512):
    """data: (B, T, C) f32 -> (B, T, 2*(C + C1)) f32, fused extender pipeline."""
    B, T, C = data.shape
    C1 = w.shape[1]
    C_mid = C + C1
    C_out = 2 * C_mid
    M = B * T

    params_bytes = 4 * (C * C1 + C1 + C_mid)
    eff_tile, vmem_limit = _choose_tile(M, C, C_out, params_bytes, tile_m)
    grid_m = _cdiv(M, eff_tile)  # ragged last row block is clipped by Pallas

    x2d = data.reshape(M, C)
    b2d = b.reshape(1, C1)
    scale2d = scale.reshape(1, C_mid)

    kernel = functools.partial(_extend_kernel, C=C, C1=C1)
    cost = pl.CostEstimate(
        flops=2 * M * C * C1,
        transcendentals=M * C_mid,
        bytes_accessed=4 * (M * C + M * C_out + C * C1 + C1 + C_mid),
    )

    def _run(single_buffer_params):
        const_kw = {"pipeline_mode": pl.Buffered(1)} if single_buffer_params else {}
        return pl.pallas_call(
            kernel,
            out_shape=jax.ShapeDtypeStruct((M, C_out), jnp.float32),
            grid_spec=pltpu.PrefetchScalarGridSpec(
                num_scalar_prefetch=0,
                grid=(grid_m,),
                in_specs=[
                    pl.BlockSpec((eff_tile, C), lambda i: (i, 0)),
                    pl.BlockSpec((C, C1), lambda i: (0, 0), **const_kw),
                    pl.BlockSpec((1, C1), lambda i: (0, 0), **const_kw),
                    pl.BlockSpec((1, C_mid), lambda i: (0, 0), **const_kw),
                ],
                out_specs=pl.BlockSpec((eff_tile, C_out), lambda i: (i, 0)),
            ),
            compiler_params=pltpu.CompilerParams(
                dimension_semantics=("parallel",),
                vmem_limit_bytes=vmem_limit,
            ),
            cost_estimate=cost,
        )(x2d, w, b2d, scale2d)

    try:
        out2d = _run(single_buffer_params=True)
    except Exception:
        # Fallback for jax versions that reject pipeline_mode=pl.Buffered(1);
        # identical semantics, just default (double) buffering on the params.
        out2d = _run(single_buffer_params=False)

    return out2d.reshape(B, T, C_out)


def _reference(data, w, b, scale):
    # Plain-JAX reference of the same sequential extender pipeline.
    feat = jnp.maximum(jnp.einsum("btc,cd->btd", data, w) + b, 0.0)
    x1 = jnp.concatenate([data, feat], axis=2)
    x2 = jnp.tanh(x1 * scale)
    return jnp.concatenate([x1, x2], axis=2)


if __name__ == "__main__":
    B, T, C, C1 = 2, 8, 32, 32

    key = jax.random.PRNGKey(0)
    k_data, k_w, k_b, k_s = jax.random.split(key, 4)

    data = jax.random.normal(k_data, (B, T, C), dtype=jnp.float32)
    # Deterministic synthetic extender parameters (no checkpoint load).
    w = jax.random.normal(k_w, (C, C1), dtype=jnp.float32) * 0.1
    b = jax.random.normal(k_b, (C1,), dtype=jnp.float32) * 0.1
    scale = jax.random.normal(k_s, (C + C1,), dtype=jnp.float32) * 0.5

    out = jax.block_until_ready(extend_data_multiple(data, w, b, scale))

    ref = _reference(data, w, b, scale)
    assert out.shape == (B, T, 2 * (C + C1)), out.shape
    assert jnp.allclose(out, ref, atol=1e-5, rtol=1e-5), "mismatch vs reference"

    print("KERNEL_OK")
</pallas_src>

<mosaic_0001>
module attributes {stable_mosaic.version = 11 : i64} {
  func.func @_extend_kernel(%arg0: i32, %arg1: memref<8x32xf32, #tpu.memory_space<vmem>>, %arg2: memref<32x32xf32, #tpu.memory_space<vmem>>, %arg3: memref<1x32xf32, #tpu.memory_space<vmem>>, %arg4: memref<1x64xf32, #tpu.memory_space<vmem>>, %arg5: memref<8x128xf32, #tpu.memory_space<vmem>>) attributes {dimension_semantics = [#tpu.dimension_semantics<parallel>], iteration_bounds = array<i64: 2>, scalar_prefetch = 0 : i64, scratch_operands = 0 : i64, tpu.core_type = #tpu.core_type<tc>, window_params = [{transform_indices = @transform_0, window_bounds = array<i64: 8, 32>}, {pipeline_mode = #tpu.pipeline_mode<synchronous>, transform_indices = @transform_1, window_bounds = array<i64: 32, 32>}, {pipeline_mode = #tpu.pipeline_mode<synchronous>, transform_indices = @transform_2, window_bounds = array<i64: 1, 32>}, {pipeline_mode = #tpu.pipeline_mode<synchronous>, transform_indices = @transform_3, window_bounds = array<i64: 1, 64>}, {transform_indices = @transform_4, window_bounds = array<i64: 8, 128>}]} {
    %c0 = arith.constant 0 : index
    %c0_0 = arith.constant 0 : index
    %0 = vector.load %arg1[%c0, %c0_0] : memref<8x32xf32, #tpu.memory_space<vmem>>, vector<8x32xf32>
    %c0_1 = arith.constant 0 : index
    %c0_2 = arith.constant 0 : index
    %1 = vector.load %arg4[%c0_1, %c0_2] : memref<1x64xf32, #tpu.memory_space<vmem>>, vector<1x64xf32>
    %c0_3 = arith.constant 0 : index
    %c0_4 = arith.constant 0 : index
    %2 = vector.load %arg2[%c0_3, %c0_4] : memref<32x32xf32, #tpu.memory_space<vmem>>, vector<32x32xf32>
    %cst = arith.constant dense<0.000000e+00> : vector<8x32xf32>
    %3 = tpu.matmul %0, %2, %cst {dimension_numbers = #tpu.dot_dimension_numbers<[1], [0], [0], [1], [0, 0, 1, 1], [], []>} : vector<8x32xf32>, vector<32x32xf32>, vector<8x32xf32> -> vector<8x32xf32>
    %c0_5 = arith.constant 0 : index
    %c0_6 = arith.constant 0 : index
    %4 = vector.load %arg3[%c0_5, %c0_6] : memref<1x32xf32, #tpu.memory_space<vmem>>, vector<1x32xf32>
    %5 = vector.broadcast %4 : vector<1x32xf32> to vector<8x32xf32>
    %6 = arith.addf %3, %5 : vector<8x32xf32>
    %cst_7 = arith.constant 0.000000e+00 : f32
    %7 = vector.broadcast %cst_7 : f32 to vector<8x32xf32>
    %8 = arith.maximumf %6, %7 : vector<8x32xf32>
    %c0_8 = arith.constant 0 : index
    %c0_9 = arith.constant 0 : index
    %9 = vector.load %arg5[%c0_8, %c0_9] : memref<8x128xf32, #tpu.memory_space<vmem>>, vector<8x32xf32>
    tpu.vector_store %arg5[%c0_8, %c0_9], %0 {strides = array<i32>} : memref<8x128xf32, #tpu.memory_space<vmem>>, vector<8x32xf32>,
    %10 = vector.extract_strided_slice %1 {offsets = [0, 0], sizes = [1, 32], strides = [1, 1]} : vector<1x64xf32> to vector<1x32xf32>
    %11 = vector.broadcast %10 : vector<1x32xf32> to vector<8x32xf32>
    %12 = arith.mulf %0, %11 : vector<8x32xf32>
    %13 = math.tanh %12 : vector<8x32xf32>
    %c0_10 = arith.constant 0 : index
    %c64 = arith.constant 64 : index
    %14 = vector.load %arg5[%c0_10, %c64] : memref<8x128xf32, #tpu.memory_space<vmem>>, vector<8x32xf32>
    tpu.vector_store %arg5[%c0_10, %c64], %13 {strides = array<i32>} : memref<8x128xf32, #tpu.memory_space<vmem>>, vector<8x32xf32>,
    %c0_11 = arith.constant 0 : index
    %c32 = arith.constant 32 : index
    %15 = vector.load %arg5[%c0_11, %c32] : memref<8x128xf32, #tpu.memory_space<vmem>>, vector<8x32xf32>
    tpu.vector_store %arg5[%c0_11, %c32], %8 {strides = array<i32>} : memref<8x128xf32, #tpu.memory_space<vmem>>, vector<8x32xf32>,
    %16 = vector.extract_strided_slice %1 {offsets = [0, 32], sizes = [1, 32], strides = [1, 1]} : vector<1x64xf32> to vector<1x32xf32>
    %17 = vector.broadcast %16 : vector<1x32xf32> to vector<8x32xf32>
    %18 = arith.mulf %8, %17 : vector<8x32xf32>
    %19 = math.tanh %18 : vector<8x32xf32>
    %c0_12 = arith.constant 0 : index
    %c96 = arith.constant 96 : index
    %20 = vector.load %arg5[%c0_12, %c96] : memref<8x128xf32, #tpu.memory_space<vmem>>, vector<8x32xf32>
    tpu.vector_store %arg5[%c0_12, %c96], %19 {strides = array<i32>} : memref<8x128xf32, #tpu.memory_space<vmem>>, vector<8x32xf32>,
    return
  }
  func.func @transform_0(%arg0: i32) -> (i32, i32) {
    %c0_i32 = arith.constant 0 : i32
    %c0_i32_0 = arith.constant 0 : i32
    return %arg0, %c0_i32 : i32, i32
  }
  func.func @transform_1(%arg0: i32) -> (i32, i32) {
    %c0_i32 = arith.constant 0 : i32
    %c0_i32_0 = arith.constant 0 : i32
    %c0_i32_1 = arith.constant 0 : i32
    return %c0_i32, %c0_i32_0 : i32, i32
  }
  func.func @transform_2(%arg0: i32) -> (i32, i32) {
    %c0_i32 = arith.constant 0 : i32
    %c0_i32_0 = arith.constant 0 : i32
    %c0_i32_1 = arith.constant 0 : i32
    return %c0_i32, %c0_i32_0 : i32, i32
  }
  func.func @transform_3(%arg0: i32) -> (i32, i32) {
    %c0_i32 = arith.constant 0 : i32
    %c0_i32_0 = arith.constant 0 : i32
    %c0_i32_1 = arith.constant 0 : i32
    return %c0_i32, %c0_i32_0 : i32, i32
  }
  func.func @transform_4(%arg0: i32) -> (i32, i32) {
    %c0_i32 = arith.constant 0 : i32
    %c0_i32_0 = arith.constant 0 : i32
    return %arg0, %c0_i32 : i32, i32
  }
}

module attributes {stable_mosaic.version = 11 : i64} {
  func.func @_extend_kernel(%arg0: i32, %arg1: memref<8x32xf32, #tpu.memory_space<vmem>>, %arg2: memref<32x32xf32, #tpu.memory_space<vmem>>, %arg3: memref<1x32xf32, #tpu.memory_space<vmem>>, %arg4: memref<1x64xf32, #tpu.memory_space<vmem>>, %arg5: memref<8x128xf32, #tpu.memory_space<vmem>>) attributes {dimension_semantics = [#tpu.dimension_semantics<parallel>], iteration_bounds = array<i64: 2>, scalar_prefetch = 0 : i64, scratch_operands = 0 : i64, tpu.core_type = #tpu.core_type<tc>, window_params = [{transform_indices = @transform_0, window_bounds = array<i64: 8, 32>}, {pipeline_mode = #tpu.pipeline_mode<synchronous>, transform_indices = @transform_1, window_bounds = array<i64: 32, 32>}, {pipeline_mode = #tpu.pipeline_mode<synchronous>, transform_indices = @transform_2, window_bounds = array<i64: 1, 32>}, {pipeline_mode = #tpu.pipeline_mode<synchronous>, transform_indices = @transform_3, window_bounds = array<i64: 1, 64>}, {transform_indices = @transform_4, window_bounds = array<i64: 8, 128>}]} {
    %c0 = arith.constant 0 : index
    %c0_0 = arith.constant 0 : index
    %0 = vector.load %arg1[%c0, %c0_0] : memref<8x32xf32, #tpu.memory_space<vmem>>, vector<8x32xf32>
    %c0_1 = arith.constant 0 : index
    %c0_2 = arith.constant 0 : index
    %1 = vector.load %arg4[%c0_1, %c0_2] : memref<1x64xf32, #tpu.memory_space<vmem>>, vector<1x64xf32>
    %c0_3 = arith.constant 0 : index
    %c0_4 = arith.constant 0 : index
    %2 = vector.load %arg2[%c0_3, %c0_4] : memref<32x32xf32, #tpu.memory_space<vmem>>, vector<32x32xf32>
    %cst = arith.constant dense<0.000000e+00> : vector<8x32xf32>
    %3 = tpu.matmul %0, %2, %cst {dimension_numbers = #tpu.dot_dimension_numbers<[1], [0], [0], [1], [0, 0, 1, 1], [], []>} : vector<8x32xf32>, vector<32x32xf32>, vector<8x32xf32> -> vector<8x32xf32>
    %c0_5 = arith.constant 0 : index
    %c0_6 = arith.constant 0 : index
    %4 = vector.load %arg3[%c0_5, %c0_6] : memref<1x32xf32, #tpu.memory_space<vmem>>, vector<1x32xf32>
    %5 = vector.broadcast %4 : vector<1x32xf32> to vector<8x32xf32>
    %6 = arith.addf %3, %5 : vector<8x32xf32>
    %cst_7 = arith.constant 0.000000e+00 : f32
    %7 = vector.broadcast %cst_7 : f32 to vector<8x32xf32>
    %8 = arith.maximumf %6, %7 : vector<8x32xf32>
    %c0_8 = arith.constant 0 : index
    %c0_9 = arith.constant 0 : index
    %9 = vector.load %arg5[%c0_8, %c0_9] : memref<8x128xf32, #tpu.memory_space<vmem>>, vector<8x32xf32>
    tpu.vector_store %arg5[%c0_8, %c0_9], %0 {strides = array<i32>} : memref<8x128xf32, #tpu.memory_space<vmem>>, vector<8x32xf32>,
    %10 = vector.extract_strided_slice %1 {offsets = [0, 0], sizes = [1, 32], strides = [1, 1]} : vector<1x64xf32> to vector<1x32xf32>
    %11 = vector.broadcast %10 : vector<1x32xf32> to vector<8x32xf32>
    %12 = arith.mulf %0, %11 : vector<8x32xf32>
    %13 = math.tanh %12 : vector<8x32xf32>
    %c0_10 = arith.constant 0 : index
    %c64 = arith.constant 64 : index
    %14 = vector.load %arg5[%c0_10, %c64] : memref<8x128xf32, #tpu.memory_space<vmem>>, vector<8x32xf32>
    tpu.vector_store %arg5[%c0_10, %c64], %13 {strides = array<i32>} : memref<8x128xf32, #tpu.memory_space<vmem>>, vector<8x32xf32>,
    %c0_11 = arith.constant 0 : index
    %c32 = arith.constant 32 : index
    %15 = vector.load %arg5[%c0_11, %c32] : memref<8x128xf32, #tpu.memory_space<vmem>>, vector<8x32xf32>
    tpu.vector_store %arg5[%c0_11, %c32], %8 {strides = array<i32>} : memref<8x128xf32, #tpu.memory_space<vmem>>, vector<8x32xf32>,
    %16 = vector.extract_strided_slice %1 {offsets = [0, 32], sizes = [1, 32], strides = [1, 1]} : vector<1x64xf32> to vector<1x32xf32>
    %17 = vector.broadcast %16 : vector<1x32xf32> to vector<8x32xf32>
    %18 = arith.mulf %8, %17 : vector<8x32xf32>
    %19 = math.tanh %18 : vector<8x32xf32>
    %c0_12 = arith.constant 0 : index
    %c96 = arith.constant 96 : index
    %20 = vector.load %arg5[%c0_12, %c96] : memref<8x128xf32, #tpu.memory_space<vmem>>, vector<8x32xf32>
    tpu.vector_store %arg5[%c0_12, %c96], %19 {strides = array<i32>} : memref<8x128xf32, #tpu.memory_space<vmem>>, vector<8x32xf32>,
    return
  }
  func.func @transform_0(%arg0: i32) -> (i32, i32) {
    %c0_i32 = arith.constant 0 : i32
    %c0_i32_0 = arith.constant 0 : i32
    return %arg0, %c0_i32 : i32, i32
  }
  func.func @transform_1(%arg0: i32) -> (i32, i32) {
    %c0_i32 = arith.constant 0 : i32
    %c0_i32_0 = arith.constant 0 : i32
    %c0_i32_1 = arith.constant 0 : i32
    return %c0_i32, %c0_i32_0 : i32, i32
  }
  func.func @transform_2(%arg0: i32) -> (i32, i32) {
    %c0_i32 = arith.constant 0 : i32
    %c0_i32_0 = arith.constant 0 : i32
    %c0_i32_1 = arith.constant 0 : i32
    return %c0_i32, %c0_i32_0 : i32, i32
  }
  func.func @transform_3(%arg0: i32) -> (i32, i32) {
    %c0_i32 = arith.constant 0 : i32
    %c0_i32_0 = arith.constant 0 : i32
    %c0_i32_1 = arith.constant 0 : i32
    return %c0_i32, %c0_i32_0 : i32, i32
  }
  func.func @transform_4(%arg0: i32) -> (i32, i32) {
    %c0_i32 = arith.constant 0 : i32
    %c0_i32_0 = arith.constant 0 : i32
    return %arg0, %c0_i32 : i32, i32
  }
}

</mosaic_0001>

<llo_original>
// kernel: tpu_custom_call.1
$region0: #{tpu_custom_call.1}
  #allocation0 [shape = 'u32[]', space=smem, size = 0x4, offset = 0x4, fixed_abs, tag = 'smem constant byte address 0x4 - core index']
  #allocation1 [shape = 'u32[72,128]{1,0:T(1,128)}', space=vmem, size = 0x9000, scoped, tag = 'internal scratch']
  %s0 = inlined_call_operand.hbm [shape: f32[16,32], index: 0, kind: input, shape index: {}]
  %s1 = inlined_call_operand.hbm [shape: f32[32,32], index: 1, kind: input, shape index: {}]
  %s2 = inlined_call_operand.vmem [shape: f32[1,32], index: 2, kind: input, shape index: {}]
  %s3 = inlined_call_operand.vmem [shape: f32[1,64], index: 3, kind: input, shape index: {}]
  %s4 = inlined_call_operand.hbm [shape: f32[16,128], index: 4, kind: output, shape index: {}]
  %s5 = sld [smem:[#allocation0]]
  $region57: #{tpu_custom_call.1} parent=0
    _
  %s7 = ssub.s32 1, %s5
  %s8 = scalar_select 0, %s7, %s5
  $region1: #{tpu_custom_call.1} parent=0
    #allocation2 [shape = 'u8[8192]{0}', space=vmem, size = 0x2000, scoped, tag = 'input window, operand 0']
    #allocation3 [shape = 's32[2]{0}', space=sflag, size = 0x8, scoped, tag = 'scoped memory for tpu_custom_call.1']
    #allocation4 [shape = 's32[2]{0}', space=sflag, size = 0x8, scoped, tag = 'scoped memory for tpu_custom_call.1']
    #allocation5 [shape = 'u8[16384]{0}', space=vmem, size = 0x4000, scoped, tag = 'input window, operand 1, single buffered']
    #allocation6 [shape = 's32[1]{0}', space=sflag, size = 0x4, scoped, tag = 'scoped memory for tpu_custom_call.1']
    #allocation7 [shape = 'u8[8192]{0}', space=vmem, size = 0x2000, scoped, tag = 'output window, operand 0']
    %9 = vsyncpa [#allocation3], 0
    %s10 = scalar_lea.sflag [#allocation3], 1
    %11 = vsyncpa %s10, 0
    %12 = vsyncpa [#allocation6], 0
    %13 = vsyncpa [#allocation4], 0
    %s14 = scalar_lea.sflag [#allocation4], 1
    %15 = vsyncpa %s14, 0
    loop: start=0, step=1, limit=4
    $region2: #{tpu_custom_call.1} parent=1 // loop_pre_header
      _
    $region3: #{tpu_custom_call.1} parent=1 // loop_header
      %s17 = sphi 0, %s21
      %p18 = scmp.ge.s32.totalorder %s17, 4
      %s27 = sphi 0, %s29
      %s30 = sphi 0, %s27
      %s31 = sphi 0, %s30
      %s47 = sphi 0, %s31
      %s51 = sphi 0, %s51
      %s53 = sphi 0, %s51
      %s54 = sphi 0, %s53
      %s68 = sphi 0, %s54
      %s72 = sphi 0, %s72
      %s74 = sphi 0, %s72
      %s75 = sphi 0, %s74
      %s89 = sphi 0, %s75
      %s93 = sphi 0, %s93
      %s95 = sphi 0, %s93
      %s96 = sphi 0, %s95
      %s110 = sphi 0, %s96
      %s116 = sphi 0, %s118
      %s119 = sphi 0, %s116
      %s120 = sphi 0, %s119
      %s136 = sphi 0, %s120
    $region4: #{tpu_custom_call.1} parent=1 // loop_header_branch
      %20 = sbr.rel (%p18) target = $region8
    $region5: #{tpu_custom_call.1} parent=1 // loop_body
      %s22 = ssub.s32 %s17, 1
      %s23 = ssub.s32 %s17, 2
      %s24 = sadd.s32 %s17, 1
      %s25 = ssub.s32 %s17, %s24
      %p26 = scmp.eq.s32.totalorder %s25, 0
      %s28 = sadd.s32 %s27, 1
      %s29 = scalar_select %p26, %s27, %s28
      %p32 = pneg %p26
      %p33 = scmp.eq.s32.totalorder %s17, 1
      %p34 = por %p32, %p33
      %p35 = scmp.ne.s32.totalorder %s27, %s30
      %p36 = scmp.eq.s32.totalorder %s17, 0
      %p37 = por %p35, %p36
      %p38 = scmp.ne.s32.totalorder %s27, %s30
      %p39 = scmp.eq.s32.totalorder %s22, 1
      %p40 = por %p38, %p39
      %p41 = scmp.ne.s32.totalorder %s30, %s31
      %p42 = scmp.eq.s32.totalorder %s22, 0
      %p43 = por %p41, %p42
      %p44 = scmp.ne.s32.totalorder %s30, %s31
      %p45 = scmp.eq.s32.totalorder %s23, 1
      %p46 = por %p44, %p45
      %p48 = scmp.ne.s32.totalorder %s31, %s47
      %p49 = scmp.eq.s32.totalorder %s23, 0
      %p50 = por %p48, %p49
      %s52 = sadd.s32 %s51, 1
      %p55 = scmp.eq.s32.totalorder %s17, 1
      %p56 = scmp.ne.s32.totalorder %s51, %s53
      %p57 = scmp.eq.s32.totalorder %s17, 0
      %p58 = por %p56, %p57
      %p59 = scmp.ne.s32.totalorder %s51, %s53
      %p60 = scmp.eq.s32.totalorder %s22, 1
      %p61 = por %p59, %p60
      %p62 = scmp.ne.s32.totalorder %s53, %s54
      %p63 = scmp.eq.s32.totalorder %s22, 0
      %p64 = por %p62, %p63
      %p65 = scmp.ne.s32.totalorder %s53, %s54
      %p66 = scmp.eq.s32.totalorder %s23, 1
      %p67 = por %p65, %p66
      %p69 = scmp.ne.s32.totalorder %s54, %s68
      %p70 = scmp.eq.s32.totalorder %s23, 0
      %p71 = por %p69, %p70
      %s73 = sadd.s32 %s72, 1
      %p76 = scmp.eq.s32.totalorder %s17, 1
      %p77 = scmp.ne.s32.totalorder %s72, %s74
      %p78 = scmp.eq.s32.totalorder %s17, 0
      %p79 = por %p77, %p78
      %p80 = scmp.ne.s32.totalorder %s72, %s74
      %p81 = scmp.eq.s32.totalorder %s22, 1
      %p82 = por %p80, %p81
      %p83 = scmp.ne.s32.totalorder %s74, %s75
      %p84 = scmp.eq.s32.totalorder %s22, 0
      %p85 = por %p83, %p84
      %p86 = scmp.ne.s32.totalorder %s74, %s75
      %p87 = scmp.eq.s32.totalorder %s23, 1
      %p88 = por %p86, %p87
      %p90 = scmp.ne.s32.totalorder %s75, %s89
      %p91 = scmp.eq.s32.totalorder %s23, 0
      %p92 = por %p90, %p91
      %s94 = sadd.s32 %s93, 1
      %p97 = scmp.eq.s32.totalorder %s17, 1
      %p98 = scmp.ne.s32.totalorder %s93, %s95
      %p99 = scmp.eq.s32.totalorder %s17, 0
      %p100 = por %p98, %p99
      %p101 = scmp.ne.s32.totalorder %s93, %s95
      %p102 = scmp.eq.s32.totalorder %s22, 1
      %p103 = por %p101, %p102
      %p104 = scmp.ne.s32.totalorder %s95, %s96
      %p105 = scmp.eq.s32.totalorder %s22, 0
      %p106 = por %p104, %p105
      %p107 = scmp.ne.s32.totalorder %s95, %s96
      %p108 = scmp.eq.s32.totalorder %s23, 1
      %p109 = por %p107, %p108
      %p111 = scmp.ne.s32.totalorder %s96, %s110
      %p112 = scmp.eq.s32.totalorder %s23, 0
      %p113 = por %p111, %p112
      %s114 = ssub.s32 %s17, %s24
      %p115 = scmp.eq.s32.totalorder %s114, 0
      %s117 = sadd.s32 %s116, 1
      %s118 = scalar_select %p115, %s116, %s117
      %p121 = pneg %p115
      %p122 = scmp.eq.s32.totalorder %s17, 1
      %p123 = por %p121, %p122
      %p124 = scmp.ne.s32.totalorder %s116, %s119
      %p125 = scmp.eq.s32.totalorder %s17, 0
      %p126 = por %p124, %p125
      %p127 = scmp.ne.s32.totalorder %s116, %s119
      %p128 = scmp.eq.s32.totalorder %s22, 1
      %p129 = por %p127, %p128
      %p130 = scmp.ne.s32.totalorder %s119, %s120
      %p131 = scmp.eq.s32.totalorder %s22, 0
      %p132 = por %p130, %p131
      %p133 = scmp.ne.s32.totalorder %s119, %s120
      %p134 = scmp.eq.s32.totalorder %s23, 1
      %p135 = por %p133, %p134
      %p137 = scmp.ne.s32.totalorder %s120, %s136
      %p138 = scmp.eq.s32.totalorder %s23, 0
      %p139 = por %p137, %p138
      %p140 = scmp.le.s32.totalorder 1, %s17
      %p141 = scmp.lt.s32.totalorder %s17, 3
      %p142 = pnand %p140, %p141
      %p143 = pneg %p142
      // Predicated region
      $region9: #{tpu_custom_call.1} parent=5 // pred_check
        _
      $region10: #{tpu_custom_call.1} parent=5 // pred_check_branch
        %145 = sbr.rel (%p142) target = $region12
      $region11: #{tpu_custom_call.1} parent=5 // pred_region
        %s146 = ssub.s32 %s17, 1
        // Predicated region
        $region13: #{tpu_custom_call.1} parent=11 // pred_check
          %p147 = pneg %p64
        $region14: #{tpu_custom_call.1} parent=11 // pred_check_branch
          %149 = sbr.rel (%p147) target = $region16
        $region15: #{tpu_custom_call.1} parent=11 // pred_region
          %151 = vsyncadd [#allocation6], 0
          %s152 = sshll.u32 %s1, 4
          %s153 = int_to_ptr.hbm [resolvable:$true] %s152
          %s154 = sshll.u32 [#allocation5], 4
          %s155 = int_to_ptr.vmem [resolvable:$true] %s154
          %160 = dma.hbm_to_vmem [thread:$0]  %s153, 512, %s155, [#allocation6], 128, 128, 8
        $region16: #{tpu_custom_call.1} parent=11 // pred_fallthru
          _
        // Predicated region
        $region17: #{tpu_custom_call.1} parent=11 // pred_check
          %p161 = pneg %p85
        $region18: #{tpu_custom_call.1} parent=11 // pred_check_branch
          %163 = sbr.rel (%p161) target = $region20
        $region19: #{tpu_custom_call.1} parent=11 // pred_region
          _
        $region20: #{tpu_custom_call.1} parent=11 // pred_fallthru
          _
        // Predicated region
        $region21: #{tpu_custom_call.1} parent=11 // pred_check
          %p164 = pneg %p106
        $region22: #{tpu_custom_call.1} parent=11 // pred_check_branch
          %166 = sbr.rel (%p164) target = $region24
        $region23: #{tpu_custom_call.1} parent=11 // pred_region
          _
        $region24: #{tpu_custom_call.1} parent=11 // pred_fallthru
          _
      $region12: #{tpu_custom_call.1} parent=5 // pred_fallthru
        _
      %p167 = scmp.lt.s32.totalorder %s17, 2
      // Predicated region
      $region25: #{tpu_custom_call.1} parent=5 // pred_check
        %p168 = pneg %p167
      $region26: #{tpu_custom_call.1} parent=5 // pred_check_branch
        %170 = sbr.rel (%p168) target = $region28
      $region27: #{tpu_custom_call.1} parent=5 // pred_region
        // Predicated region
        $region29: #{tpu_custom_call.1} parent=27 // pred_check
          %p171 = pneg %p37
        $region30: #{tpu_custom_call.1} parent=27 // pred_check_branch
          %173 = sbr.rel (%p171) target = $region32
        $region31: #{tpu_custom_call.1} parent=27 // pred_region
          %s174 = sand.u32 %s27, 1
          %s175 = scalar_lea.sflag [#allocation3], %s174
          %s176 = sand.u32 %s27, 1
          %s177 = smul.addr %s176, 8
          %s178 = scalar_lea.vmem [#allocation2], %s177
          %180 = vsyncadd %s175, 0
          %s181 = smul.addr %s17, 8
          %s182 = scalar_lea.hbm %s0, %s181
          %s184 = sshll.u32 %s182, 4
          %s185 = int_to_ptr.hbm [resolvable:$true] %s184
          %s186 = sshll.u32 %s178, 4
          %s187 = int_to_ptr.vmem [resolvable:$true] %s186
          %189 = dma.hbm_to_vmem [thread:$0]  %s185, 128, %s187, %s175
        $region32: #{tpu_custom_call.1} parent=27 // pred_fallthru
          _
      $region28: #{tpu_custom_call.1} parent=5 // pred_fallthru
        _
      %p190 = scmp.le.s32.totalorder 1, %s17
      %p191 = scmp.lt.s32.totalorder %s17, 3
      %p192 = pnand %p190, %p191
      %p193 = pneg %p192
      // Predicated region
      $region33: #{tpu_custom_call.1} parent=5 // pred_check
        _
      $region34: #{tpu_custom_call.1} parent=5 // pred_check_branch
        %195 = sbr.rel (%p192) target = $region36
      $region35: #{tpu_custom_call.1} parent=5 // pred_region
        %s196 = ssub.s32 %s17, 1
        %s197 = sand.u32 %s30, 1
        %s198 = scalar_lea.sflag [#allocation3], %s197
        %s199 = sand.u32 %s30, 1
        %s200 = smul.addr %s199, 8
        %s201 = scalar_lea.vmem [#allocation2], %s200
        // Predicated region
        $region37: #{tpu_custom_call.1} parent=35 // pred_check
          %p202 = pneg %p43
        $region38: #{tpu_custom_call.1} parent=35 // pred_check_branch
          %204 = sbr.rel (%p202) target = $region40
        $region39: #{tpu_custom_call.1} parent=35 // pred_region
          %206 = dma.done %s198, 128
        $region40: #{tpu_custom_call.1} parent=35 // pred_fallthru
          _
        // Predicated region
        $region41: #{tpu_custom_call.1} parent=35 // pred_check
          %p207 = pneg %p64
        $region42: #{tpu_custom_call.1} parent=35 // pred_check_branch
          %209 = sbr.rel (%p207) target = $region44
        $region43: #{tpu_custom_call.1} parent=35 // pred_region
          %211 = dma.done [#allocation6], 512
        $region44: #{tpu_custom_call.1} parent=35 // pred_fallthru
          _
        %s212 = sand.u32 %s30, 1
        %s213 = scalar_lea.sflag [#allocation3], %s212
        %s214 = sand.u32 %s30, 1
        %s215 = smul.addr %s214, 8
        %s216 = scalar_lea.vmem [#allocation2], %s215
        %p217 = pneg %p43
        %p218 = pneg %p40
        %p219 = pneg %p64
        %p220 = pneg %p61
        %p221 = pneg %p85
        %p222 = pneg %p82
        %p223 = pneg %p106
        %p224 = pneg %p103
        %p225 = pneg %p132
        %p226 = pneg %p129
        %s227 = sand.u32 %s119, 1
        %s228 = scalar_lea.sflag [#allocation4], %s227
        %s229 = sand.u32 %s119, 1
        %s230 = smul.addr %s229, 8
        %s231 = scalar_lea.vmem [#allocation7], %s230
        %v232 = vld [vmem:[%s201] sm:$0xff]
        %v233 = vld [vmem:[%s3] sm:$0x1]
        %v234 = vld [vmem:[#allocation5] sm:$0xff]
        %v235 = vld [vmem:[#allocation5 + $0x8] sm:$0xff]
        %v236 = vld [vmem:[#allocation5 + $0x10] sm:$0xff]
        %v237 = vld [vmem:[#allocation5 + $0x18] sm:$0xff]
        %v238 = vld [vmem:[%s2] sm:$0x1]
        %v240 = vperm.slane %v238, 0
        %vm242 = vcmask 261120
        %v244 = vsel %vm242, %v232, 0
        %246 = vmatpush.msra.mxu0 0.0
        %247 = vmatpush.msra.mxu0 0.0
        %248 = vmatpush.msra.mxu0 0.0
        %249 = vmatpush.msra.mxu0 0.0
        %250 = vmatpush.msra.mxu0 0.0
        %251 = vmatpush.msra.mxu0 0.0
        %252 = vmatpush.msra.mxu0 0.0
        %253 = vmatpush.msra.mxu0 0.0
        %254 = vmatpush.msra.mxu0 0.0
        %255 = vmatpush.msra.mxu0 0.0
        %256 = vmatpush.msra.mxu0 0.0
        %257 = vmatpush.msra.mxu0 0.0
        %258 = vmatpush.msra.mxu0 %v237
        %259 = vmatpush.msra.mxu0 %v236
        %260 = vmatpush.msra.mxu0 %v235
        %261 = vmatpush.msra.mxu0 %v234
        %262 = vmatmul.f32.gmra.mxu0 %v244
        %v263 = vpop.f32.mrf.mxu0
        %v264 = vadd.f32 %v240, %v263
        %265 = vdwg.mxu0
        %v266 = vmax.f32 %v264, 0.0
        %267 = vst.msk [vmem:[%s231] sm:$0xff] %vm242, %v232
        %v269 = vperm.slane %v233, 0
        %v271 = vmul.f32 %v232, %v269
        %v272 = vtanh.pop %v271
        %274 = vrot.lane.b32.xlu0 %v272, 64
        %v275 = vpop.permute.xlu0 %274
        %vm277 = vcmask 785920
        %278 = vst.msk [vmem:[%s231] sm:$0xff] %vm277, %v275
        %280 = vrot.lane.b32.xlu0 %v266, 32
        %v281 = vpop.permute.xlu0 %280
        %vm283 = vcmask 523520
        %284 = vst.msk [vmem:[%s231] sm:$0xff] %vm283, %v281
        %285 = vrot.lane.b32.xlu0 %v269, 96
        %v286 = vpop.permute.xlu0 %285
        %v288 = vmul.f32 %v266, %v286
        %v289 = vtanh.pop %v288
        %291 = vrot.lane.b32.xlu0 %v289, 96
        %v292 = vpop.permute.xlu0 %291
        %vm294 = vcmask 1048320
        %295 = vst.msk [vmem:[%s231] sm:$0xff] %vm294, %v292
        %s296 = sand.u32 %s119, 1
        %s297 = scalar_lea.sflag [#allocation4], %s296
        %s298 = sand.u32 %s119, 1
        %s299 = smul.addr %s298, 8
        %s300 = scalar_lea.vmem [#allocation7], %s299
        // Predicated region
        $region45: #{tpu_custom_call.1} parent=35 // pred_check
          %p301 = pneg %p129
        $region46: #{tpu_custom_call.1} parent=35 // pred_check_branch
          %303 = sbr.rel (%p301) target = $region48
        $region47: #{tpu_custom_call.1} parent=35 // pred_region
          %305 = vsyncadd %s297, 0
          %s306 = smul.addr %s22, 8
          %s307 = scalar_lea.hbm %s4, %s306
          %s309 = sshll.u32 %s300, 4
          %s310 = int_to_ptr.vmem [resolvable:$true] %s309
          %s311 = sshll.u32 %s307, 4
          %s312 = int_to_ptr.hbm [resolvable:$true] %s311
          %314 = dma.vmem_to_hbm [thread:$0]  %s310, 128, %s312, %s297
        $region48: #{tpu_custom_call.1} parent=35 // pred_fallthru
          _
      $region36: #{tpu_custom_call.1} parent=5 // pred_fallthru
        _
      %p315 = scmp.le.s32.totalorder 2, %s17
      // Predicated region
      $region49: #{tpu_custom_call.1} parent=5 // pred_check
        %p316 = pneg %p315
      $region50: #{tpu_custom_call.1} parent=5 // pred_check_branch
        %318 = sbr.rel (%p316) target = $region52
      $region51: #{tpu_custom_call.1} parent=5 // pred_region
        %s319 = ssub.s32 %s17, 2
        // Predicated region
        $region53: #{tpu_custom_call.1} parent=51 // pred_check
          %p320 = pneg %p135
        $region54: #{tpu_custom_call.1} parent=51 // pred_check_branch
          %322 = sbr.rel (%p320) target = $region56
        $region55: #{tpu_custom_call.1} parent=51 // pred_region
          %s323 = sand.u32 %s120, 1
          %s324 = scalar_lea.sflag [#allocation4], %s323
          %s325 = sand.u32 %s120, 1
          %s326 = smul.addr %s325, 8
          %s327 = scalar_lea.vmem [#allocation7], %s326
          %329 = dma.done %s324, 128
        $region56: #{tpu_custom_call.1} parent=51 // pred_fallthru
          _
      $region52: #{tpu_custom_call.1} parent=5 // pred_fallthru
        _
    $region6: #{tpu_custom_call.1} parent=1 // loop_footer
      %s21 = sadd.s32 1, %s17
    $region7: #{tpu_custom_call.1} parent=1 // loop_footer_branch
      %16 = sbr.rel target = $region3
    $region8: #{tpu_custom_call.1} parent=1 // loop_exit
      _
    %330 = vsyncpa [#allocation3], 1
    %s331 = scalar_lea.sflag [#allocation3], 1
    %332 = vsyncpa %s331, 1
    %333 = vsyncpa [#allocation6], 1
    %334 = vsyncpa [#allocation4], 1
    %s335 = scalar_lea.sflag [#allocation4], 1
    %336 = vsyncpa %s335, 1

// kernel: tpu_custom_call.1
$region0: #{tpu_custom_call.1}
  #allocation0 [shape = 'u32[]', space=smem, size = 0x4, offset = 0x4, fixed_abs, tag = 'smem constant byte address 0x4 - core index']
  #allocation1 [shape = 'u32[72,128]{1,0:T(1,128)}', space=vmem, size = 0x9000, scoped, tag = 'internal scratch']
  %s0 = inlined_call_operand.hbm [shape: f32[16,32], index: 0, kind: input, shape index: {}]
  %s1 = inlined_call_operand.hbm [shape: f32[32,32], index: 1, kind: input, shape index: {}]
  %s2 = inlined_call_operand.vmem [shape: f32[1,32], index: 2, kind: input, shape index: {}]
  %s3 = inlined_call_operand.vmem [shape: f32[1,64], index: 3, kind: input, shape index: {}]
  %s4 = inlined_call_operand.hbm [shape: f32[16,128], index: 4, kind: output, shape index: {}]
  %s5 = sld [smem:[#allocation0]]
  $region57: #{tpu_custom_call.1} parent=0
    _
  %s7 = ssub.s32 1, %s5
  %s8 = scalar_select 0, %s7, %s5
  $region1: #{tpu_custom_call.1} parent=0
    #allocation2 [shape = 'u8[8192]{0}', space=vmem, size = 0x2000, scoped, tag = 'input window, operand 0']
    #allocation3 [shape = 's32[2]{0}', space=sflag, size = 0x8, scoped, tag = 'scoped memory for tpu_custom_call.1']
    #allocation4 [shape = 's32[2]{0}', space=sflag, size = 0x8, scoped, tag = 'scoped memory for tpu_custom_call.1']
    #allocation5 [shape = 'u8[16384]{0}', space=vmem, size = 0x4000, scoped, tag = 'input window, operand 1, single buffered']
    #allocation6 [shape = 's32[1]{0}', space=sflag, size = 0x4, scoped, tag = 'scoped memory for tpu_custom_call.1']
    #allocation7 [shape = 'u8[8192]{0}', space=vmem, size = 0x2000, scoped, tag = 'output window, operand 0']
    %9 = vsyncpa [#allocation3], 0
    %s10 = scalar_lea.sflag [#allocation3], 1
    %11 = vsyncpa %s10, 0
    %12 = vsyncpa [#allocation6], 0
    %13 = vsyncpa [#allocation4], 0
    %s14 = scalar_lea.sflag [#allocation4], 1
    %15 = vsyncpa %s14, 0
    loop: start=0, step=1, limit=4
    $region2: #{tpu_custom_call.1} parent=1 // loop_pre_header
      _
    $region3: #{tpu_custom_call.1} parent=1 // loop_header
      %s17 = sphi 0, %s21
      %p18 = scmp.ge.s32.totalorder %s17, 4
      %s27 = sphi 0, %s29
      %s30 = sphi 0, %s27
      %s31 = sphi 0, %s30
      %s47 = sphi 0, %s31
      %s51 = sphi 0, %s51
      %s53 = sphi 0, %s51
      %s54 = sphi 0, %s53
      %s68 = sphi 0, %s54
      %s72 = sphi 0, %s72
      %s74 = sphi 0, %s72
      %s75 = sphi 0, %s74
      %s89 = sphi 0, %s75
      %s93 = sphi 0, %s93
      %s95 = sphi 0, %s93
      %s96 = sphi 0, %s95
      %s110 = sphi 0, %s96
      %s116 = sphi 0, %s118
      %s119 = sphi 0, %s116
      %s120 = sphi 0, %s119
      %s136 = sphi 0, %s120
    $region4: #{tpu_custom_call.1} parent=1 // loop_header_branch
      %20 = sbr.rel (%p18) target = $region8
    $region5: #{tpu_custom_call.1} parent=1 // loop_body
      %s22 = ssub.s32 %s17, 1
      %s23 = ssub.s32 %s17, 2
      %s24 = sadd.s32 %s17, 1
      %s25 = ssub.s32 %s17, %s24
      %p26 = scmp.eq.s32.totalorder %s25, 0
      %s28 = sadd.s32 %s27, 1
      %s29 = scalar_select %p26, %s27, %s28
      %p32 = pneg %p26
      %p33 = scmp.eq.s32.totalorder %s17, 1
      %p34 = por %p32, %p33
      %p35 = scmp.ne.s32.totalorder %s27, %s30
      %p36 = scmp.eq.s32.totalorder %s17, 0
      %p37 = por %p35, %p36
      %p38 = scmp.ne.s32.totalorder %s27, %s30
      %p39 = scmp.eq.s32.totalorder %s22, 1
      %p40 = por %p38, %p39
      %p41 = scmp.ne.s32.totalorder %s30, %s31
      %p42 = scmp.eq.s32.totalorder %s22, 0
      %p43 = por %p41, %p42
      %p44 = scmp.ne.s32.totalorder %s30, %s31
      %p45 = scmp.eq.s32.totalorder %s23, 1
      %p46 = por %p44, %p45
      %p48 = scmp.ne.s32.totalorder %s31, %s47
      %p49 = scmp.eq.s32.totalorder %s23, 0
      %p50 = por %p48, %p49
      %s52 = sadd.s32 %s51, 1
      %p55 = scmp.eq.s32.totalorder %s17, 1
      %p56 = scmp.ne.s32.totalorder %s51, %s53
      %p57 = scmp.eq.s32.totalorder %s17, 0
      %p58 = por %p56, %p57
      %p59 = scmp.ne.s32.totalorder %s51, %s53
      %p60 = scmp.eq.s32.totalorder %s22, 1
      %p61 = por %p59, %p60
      %p62 = scmp.ne.s32.totalorder %s53, %s54
      %p63 = scmp.eq.s32.totalorder %s22, 0
      %p64 = por %p62, %p63
      %p65 = scmp.ne.s32.totalorder %s53, %s54
      %p66 = scmp.eq.s32.totalorder %s23, 1
      %p67 = por %p65, %p66
      %p69 = scmp.ne.s32.totalorder %s54, %s68
      %p70 = scmp.eq.s32.totalorder %s23, 0
      %p71 = por %p69, %p70
      %s73 = sadd.s32 %s72, 1
      %p76 = scmp.eq.s32.totalorder %s17, 1
      %p77 = scmp.ne.s32.totalorder %s72, %s74
      %p78 = scmp.eq.s32.totalorder %s17, 0
      %p79 = por %p77, %p78
      %p80 = scmp.ne.s32.totalorder %s72, %s74
      %p81 = scmp.eq.s32.totalorder %s22, 1
      %p82 = por %p80, %p81
      %p83 = scmp.ne.s32.totalorder %s74, %s75
      %p84 = scmp.eq.s32.totalorder %s22, 0
      %p85 = por %p83, %p84
      %p86 = scmp.ne.s32.totalorder %s74, %s75
      %p87 = scmp.eq.s32.totalorder %s23, 1
      %p88 = por %p86, %p87
      %p90 = scmp.ne.s32.totalorder %s75, %s89
      %p91 = scmp.eq.s32.totalorder %s23, 0
      %p92 = por %p90, %p91
      %s94 = sadd.s32 %s93, 1
      %p97 = scmp.eq.s32.totalorder %s17, 1
      %p98 = scmp.ne.s32.totalorder %s93, %s95
      %p99 = scmp.eq.s32.totalorder %s17, 0
      %p100 = por %p98, %p99
      %p101 = scmp.ne.s32.totalorder %s93, %s95
      %p102 = scmp.eq.s32.totalorder %s22, 1
      %p103 = por %p101, %p102
      %p104 = scmp.ne.s32.totalorder %s95, %s96
      %p105 = scmp.eq.s32.totalorder %s22, 0
      %p106 = por %p104, %p105
      %p107 = scmp.ne.s32.totalorder %s95, %s96
      %p108 = scmp.eq.s32.totalorder %s23, 1
      %p109 = por %p107, %p108
      %p111 = scmp.ne.s32.totalorder %s96, %s110
      %p112 = scmp.eq.s32.totalorder %s23, 0
      %p113 = por %p111, %p112
      %s114 = ssub.s32 %s17, %s24
      %p115 = scmp.eq.s32.totalorder %s114, 0
      %s117 = sadd.s32 %s116, 1
      %s118 = scalar_select %p115, %s116, %s117
      %p121 = pneg %p115
      %p122 = scmp.eq.s32.totalorder %s17, 1
      %p123 = por %p121, %p122
      %p124 = scmp.ne.s32.totalorder %s116, %s119
      %p125 = scmp.eq.s32.totalorder %s17, 0
      %p126 = por %p124, %p125
      %p127 = scmp.ne.s32.totalorder %s116, %s119
      %p128 = scmp.eq.s32.totalorder %s22, 1
      %p129 = por %p127, %p128
      %p130 = scmp.ne.s32.totalorder %s119, %s120
      %p131 = scmp.eq.s32.totalorder %s22, 0
      %p132 = por %p130, %p131
      %p133 = scmp.ne.s32.totalorder %s119, %s120
      %p134 = scmp.eq.s32.totalorder %s23, 1
      %p135 = por %p133, %p134
      %p137 = scmp.ne.s32.totalorder %s120, %s136
      %p138 = scmp.eq.s32.totalorder %s23, 0
      %p139 = por %p137, %p138
      %p140 = scmp.le.s32.totalorder 1, %s17
      %p141 = scmp.lt.s32.totalorder %s17, 3
      %p142 = pnand %p140, %p141
      %p143 = pneg %p142
      // Predicated region
      $region9: #{tpu_custom_call.1} parent=5 // pred_check
        _
      $region10: #{tpu_custom_call.1} parent=5 // pred_check_branch
        %145 = sbr.rel (%p142) target = $region12
      $region11: #{tpu_custom_call.1} parent=5 // pred_region
        %s146 = ssub.s32 %s17, 1
        // Predicated region
        $region13: #{tpu_custom_call.1} parent=11 // pred_check
          %p147 = pneg %p64
        $region14: #{tpu_custom_call.1} parent=11 // pred_check_branch
          %149 = sbr.rel (%p147) target = $region16
        $region15: #{tpu_custom_call.1} parent=11 // pred_region
          %151 = vsyncadd [#allocation6], 0
          %s152 = sshll.u32 %s1, 4
          %s153 = int_to_ptr.hbm [resolvable:$true] %s152
          %s154 = sshll.u32 [#allocation5], 4
          %s155 = int_to_ptr.vmem [resolvable:$true] %s154
          %160 = dma.hbm_to_vmem [thread:$0]  %s153, 512, %s155, [#allocation6], 128, 128, 8
        $region16: #{tpu_custom_call.1} parent=11 // pred_fallthru
          _
        // Predicated region
        $region17: #{tpu_custom_call.1} parent=11 // pred_check
          %p161 = pneg %p85
        $region18: #{tpu_custom_call.1} parent=11 // pred_check_branch
          %163 = sbr.rel (%p161) target = $region20
        $region19: #{tpu_custom_call.1} parent=11 // pred_region
          _
        $region20: #{tpu_custom_call.1} parent=11 // pred_fallthru
          _
        // Predicated region
        $region21: #{tpu_custom_call.1} parent=11 // pred_check
          %p164 = pneg %p106
        $region22: #{tpu_custom_call.1} parent=11 // pred_check_branch
          %166 = sbr.rel (%p164) target = $region24
        $region23: #{tpu_custom_call.1} parent=11 // pred_region
          _
        $region24: #{tpu_custom_call.1} parent=11 // pred_fallthru
          _
      $region12: #{tpu_custom_call.1} parent=5 // pred_fallthru
        _
      %p167 = scmp.lt.s32.totalorder %s17, 2
      // Predicated region
      $region25: #{tpu_custom_call.1} parent=5 // pred_check
        %p168 = pneg %p167
      $region26: #{tpu_custom_call.1} parent=5 // pred_check_branch
        %170 = sbr.rel (%p168) target = $region28
      $region27: #{tpu_custom_call.1} parent=5 // pred_region
        // Predicated region
        $region29: #{tpu_custom_call.1} parent=27 // pred_check
          %p171 = pneg %p37
        $region30: #{tpu_custom_call.1} parent=27 // pred_check_branch
          %173 = sbr.rel (%p171) target = $region32
        $region31: #{tpu_custom_call.1} parent=27 // pred_region
          %s174 = sand.u32 %s27, 1
          %s175 = scalar_lea.sflag [#allocation3], %s174
          %s176 = sand.u32 %s27, 1
          %s177 = smul.addr %s176, 8
          %s178 = scalar_lea.vmem [#allocation2], %s177
          %180 = vsyncadd %s175, 0
          %s181 = smul.addr %s17, 8
          %s182 = scalar_lea.hbm %s0, %s181
          %s184 = sshll.u32 %s182, 4
          %s185 = int_to_ptr.hbm [resolvable:$true] %s184
          %s186 = sshll.u32 %s178, 4
          %s187 = int_to_ptr.vmem [resolvable:$true] %s186
          %189 = dma.hbm_to_vmem [thread:$0]  %s185, 128, %s187, %s175
        $region32: #{tpu_custom_call.1} parent=27 // pred_fallthru
          _
      $region28: #{tpu_custom_call.1} parent=5 // pred_fallthru
        _
      %p190 = scmp.le.s32.totalorder 1, %s17
      %p191 = scmp.lt.s32.totalorder %s17, 3
      %p192 = pnand %p190, %p191
      %p193 = pneg %p192
      // Predicated region
      $region33: #{tpu_custom_call.1} parent=5 // pred_check
        _
      $region34: #{tpu_custom_call.1} parent=5 // pred_check_branch
        %195 = sbr.rel (%p192) target = $region36
      $region35: #{tpu_custom_call.1} parent=5 // pred_region
        %s196 = ssub.s32 %s17, 1
        %s197 = sand.u32 %s30, 1
        %s198 = scalar_lea.sflag [#allocation3], %s197
        %s199 = sand.u32 %s30, 1
        %s200 = smul.addr %s199, 8
        %s201 = scalar_lea.vmem [#allocation2], %s200
        // Predicated region
        $region37: #{tpu_custom_call.1} parent=35 // pred_check
          %p202 = pneg %p43
        $region38: #{tpu_custom_call.1} parent=35 // pred_check_branch
          %204 = sbr.rel (%p202) target = $region40
        $region39: #{tpu_custom_call.1} parent=35 // pred_region
          %206 = dma.done %s198, 128
        $region40: #{tpu_custom_call.1} parent=35 // pred_fallthru
          _
        // Predicated region
        $region41: #{tpu_custom_call.1} parent=35 // pred_check
          %p207 = pneg %p64
        $region42: #{tpu_custom_call.1} parent=35 // pred_check_branch
          %209 = sbr.rel (%p207) target = $region44
        $region43: #{tpu_custom_call.1} parent=35 // pred_region
          %211 = dma.done [#allocation6], 512
        $region44: #{tpu_custom_call.1} parent=35 // pred_fallthru
          _
        %s212 = sand.u32 %s30, 1
        %s213 = scalar_lea.sflag [#allocation3], %s212
        %s214 = sand.u32 %s30, 1
        %s215 = smul.addr %s214, 8
        %s216 = scalar_lea.vmem [#allocation2], %s215
        %p217 = pneg %p43
        %p218 = pneg %p40
        %p219 = pneg %p64
        %p220 = pneg %p61
        %p221 = pneg %p85
        %p222 = pneg %p82
        %p223 = pneg %p106
        %p224 = pneg %p103
        %p225 = pneg %p132
        %p226 = pneg %p129
        %s227 = sand.u32 %s119, 1
        %s228 = scalar_lea.sflag [#allocation4], %s227
        %s229 = sand.u32 %s119, 1
        %s230 = smul.addr %s229, 8
        %s231 = scalar_lea.vmem [#allocation7], %s230
        %v232 = vld [vmem:[%s201] sm:$0xff]
        %v233 = vld [vmem:[%s3] sm:$0x1]
        %v234 = vld [vmem:[#allocation5] sm:$0xff]
        %v235 = vld [vmem:[#allocation5 + $0x8] sm:$0xff]
        %v236 = vld [vmem:[#allocation5 + $0x10] sm:$0xff]
        %v237 = vld [vmem:[#allocation5 + $0x18] sm:$0xff]
        %v238 = vld [vmem:[%s2] sm:$0x1]
        %v240 = vperm.slane %v238, 0
        %vm242 = vcmask 261120
        %v244 = vsel %vm242, %v232, 0
        %246 = vmatpush.msra.mxu0 0.0
        %247 = vmatpush.msra.mxu0 0.0
        %248 = vmatpush.msra.mxu0 0.0
        %249 = vmatpush.msra.mxu0 0.0
        %250 = vmatpush.msra.mxu0 0.0
        %251 = vmatpush.msra.mxu0 0.0
        %252 = vmatpush.msra.mxu0 0.0
        %253 = vmatpush.msra.mxu0 0.0
        %254 = vmatpush.msra.mxu0 0.0
        %255 = vmatpush.msra.mxu0 0.0
        %256 = vmatpush.msra.mxu0 0.0
        %257 = vmatpush.msra.mxu0 0.0
        %258 = vmatpush.msra.mxu0 %v237
        %259 = vmatpush.msra.mxu0 %v236
        %260 = vmatpush.msra.mxu0 %v235
        %261 = vmatpush.msra.mxu0 %v234
        %262 = vmatmul.f32.gmra.mxu0 %v244
        %v263 = vpop.f32.mrf.mxu0
        %v264 = vadd.f32 %v240, %v263
        %265 = vdwg.mxu0
        %v266 = vmax.f32 %v264, 0.0
        %267 = vst.msk [vmem:[%s231] sm:$0xff] %vm242, %v232
        %v269 = vperm.slane %v233, 0
        %v271 = vmul.f32 %v232, %v269
        %v272 = vtanh.pop %v271
        %274 = vrot.lane.b32.xlu0 %v272, 64
        %v275 = vpop.permute.xlu0 %274
        %vm277 = vcmask 785920
        %278 = vst.msk [vmem:[%s231] sm:$0xff] %vm277, %v275
        %280 = vrot.lane.b32.xlu0 %v266, 32
        %v281 = vpop.permute.xlu0 %280
        %vm283 = vcmask 523520
        %284 = vst.msk [vmem:[%s231] sm:$0xff] %vm283, %v281
        %285 = vrot.lane.b32.xlu0 %v269, 96
        %v286 = vpop.permute.xlu0 %285
        %v288 = vmul.f32 %v266, %v286
        %v289 = vtanh.pop %v288
        %291 = vrot.lane.b32.xlu0 %v289, 96
        %v292 = vpop.permute.xlu0 %291
        %vm294 = vcmask 1048320
        %295 = vst.msk [vmem:[%s231] sm:$0xff] %vm294, %v292
        %s296 = sand.u32 %s119, 1
        %s297 = scalar_lea.sflag [#allocation4], %s296
        %s298 = sand.u32 %s119, 1
        %s299 = smul.addr %s298, 8
        %s300 = scalar_lea.vmem [#allocation7], %s299
        // Predicated region
        $region45: #{tpu_custom_call.1} parent=35 // pred_check
          %p301 = pneg %p129
        $region46: #{tpu_custom_call.1} parent=35 // pred_check_branch
          %303 = sbr.rel (%p301) target = $region48
        $region47: #{tpu_custom_call.1} parent=35 // pred_region
          %305 = vsyncadd %s297, 0
          %s306 = smul.addr %s22, 8
          %s307 = scalar_lea.hbm %s4, %s306
          %s309 = sshll.u32 %s300, 4
          %s310 = int_to_ptr.vmem [resolvable:$true] %s309
          %s311 = sshll.u32 %s307, 4
          %s312 = int_to_ptr.hbm [resolvable:$true] %s311
          %314 = dma.vmem_to_hbm [thread:$0]  %s310, 128, %s312, %s297
        $region48: #{tpu_custom_call.1} parent=35 // pred_fallthru
          _
      $region36: #{tpu_custom_call.1} parent=5 // pred_fallthru
        _
      %p315 = scmp.le.s32.totalorder 2, %s17
      // Predicated region
      $region49: #{tpu_custom_call.1} parent=5 // pred_check
        %p316 = pneg %p315
      $region50: #{tpu_custom_call.1} parent=5 // pred_check_branch
        %318 = sbr.rel (%p316) target = $region52
      $region51: #{tpu_custom_call.1} parent=5 // pred_region
        %s319 = ssub.s32 %s17, 2
        // Predicated region
        $region53: #{tpu_custom_call.1} parent=51 // pred_check
          %p320 = pneg %p135
        $region54: #{tpu_custom_call.1} parent=51 // pred_check_branch
          %322 = sbr.rel (%p320) target = $region56
        $region55: #{tpu_custom_call.1} parent=51 // pred_region
          %s323 = sand.u32 %s120, 1
          %s324 = scalar_lea.sflag [#allocation4], %s323
          %s325 = sand.u32 %s120, 1
          %s326 = smul.addr %s325, 8
          %s327 = scalar_lea.vmem [#allocation7], %s326
          %329 = dma.done %s324, 128
        $region56: #{tpu_custom_call.1} parent=51 // pred_fallthru
          _
      $region52: #{tpu_custom_call.1} parent=5 // pred_fallthru
        _
    $region6: #{tpu_custom_call.1} parent=1 // loop_footer
      %s21 = sadd.s32 1, %s17
    $region7: #{tpu_custom_call.1} parent=1 // loop_footer_branch
      %16 = sbr.rel target = $region3
    $region8: #{tpu_custom_call.1} parent=1 // loop_exit
      _
    %330 = vsyncpa [#allocation3], 1
    %s331 = scalar_lea.sflag [#allocation3], 1
    %332 = vsyncpa %s331, 1
    %333 = vsyncpa [#allocation6], 1
    %334 = vsyncpa [#allocation4], 1
    %s335 = scalar_lea.sflag [#allocation4], 1
    %336 = vsyncpa %s335, 1

</llo_original>
